<compile_context>
chip_gen: v5e
topology: v5e:2x2
jax: 0.10.0
libtpu: 0.0.40
codegen_flags: <defaults>
</compile_context>

<pallas_src>
import math
import functools

import jax
import jax.numpy as jnp
from jax.experimental import pallas as pl
from jax.experimental.pallas import tpu as pltpu

VOCAB = 64
D_MODEL = 32
LANES = 128


# ------------------------------ Pallas kernels ------------------------------ #

def _packed_embedding_kernel(ids_ref, lut_ref, o_ref, *, vocab, scale):
    """Lane-dense gather.

    ids_ref : (R, G)        int32  -- G consecutive tokens packed per out row
    lut_ref : (G*V, G*D)    f32    -- block-diagonal packed table (G*D == 128)
    o_ref   : (R, 128)      f32    -- lane-dense output slab
    """
    R, G = ids_ref.shape
    C = G * vocab
    # Column index over the packed one-hot width (group j occupies cols
    # [j*V, (j+1)*V)).  Built once; compares/selects ride otherwise-idle VALU
    # slots while the MXU result drains.
    col = jax.lax.broadcasted_iota(jnp.int32, (R, C), 1)
    onehot = jnp.zeros((R, C), jnp.float32)
    for j in range(G):                                   # static, unrolled (G=4)
        target = ids_ref[:, j:j + 1] + j * vocab         # (R, 1) int32
        # sqrt(d_model) folded into the one-hot value -> pure store epilogue.
        onehot = jnp.where(col == target, scale, onehot)
    # (R, G*V) @ (G*V, 128) on the MXU -> (R, 128), full-lane unmasked store.
    o_ref[...] = jnp.dot(onehot, lut_ref[...],
                         preferred_element_type=jnp.float32)


def _simple_embedding_kernel(ids_ref, lut_ref, o_ref, *, scale):
    """Fallback (shapes that don't pack to 128 lanes): plain one-hot gather."""
    N = ids_ref.shape[0]
    V = lut_ref.shape[0]
    iota = jax.lax.broadcasted_iota(jnp.int32, (N, V), 1)
    onehot = jnp.where(iota == ids_ref[...], scale, 0.0).astype(jnp.float32)
    o_ref[...] = jnp.dot(onehot, lut_ref[...],
                         preferred_element_type=jnp.float32)


# ------------------------------ wrapper ------------------------------------- #

def pack_lut_block_diagonal(lut, lanes=LANES):
    """One-time weight-layout transform: (V, D) -> block-diagonal (G*V, G*D),
    G = lanes // D, so the gather matmul emits a lane-dense (rows, 128) slab.
    In a real model this is done once at parameter-load time, not per call."""
    V, D = lut.shape
    G = lanes // D
    blk = jnp.zeros((G * V, G * D), lut.dtype)
    for j in range(G):
        blk = blk.at[j * V:(j + 1) * V, j * D:(j + 1) * D].set(lut)
    return blk


_VMEM_SPEC = pl.BlockSpec(memory_space=pltpu.MemorySpace.VMEM)


def embeddings_fwd(x_ids, lut, d_model):
    """x_ids: (B, S) int token ids; lut: (vocab, d_model) f32 table."""
    B, S = x_ids.shape
    V, D = lut.shape
    N = B * S
    scale = math.sqrt(d_model)
    ids = x_ids.reshape(N).astype(jnp.int32)

    lane_dense_ok = (LANES % D == 0) and (N % (LANES // D) == 0)
    if lane_dense_ok:
        G = LANES // D                       # tokens packed per output row
        R = N // G                           # lane-dense output rows
        lut_block = pack_lut_block_diagonal(lut)   # one-time weight transform
        out = pl.pallas_call(
            functools.partial(_packed_embedding_kernel, vocab=V, scale=scale),
            out_shape=jax.ShapeDtypeStruct((R, LANES), jnp.float32),
            in_specs=[_VMEM_SPEC, _VMEM_SPEC],       # whole arrays, VMEM resident
            out_specs=_VMEM_SPEC,
        )(ids.reshape(R, G), lut_block)
        # Row-major bitcast back to (B, S, D): free layout plumbing.
        return out.reshape(B, S, D)

    # Fallback path: single step, full (N, D) block written at once.
    out = pl.pallas_call(
        functools.partial(_simple_embedding_kernel, scale=scale),
        out_shape=jax.ShapeDtypeStruct((N, D), jnp.float32),
        in_specs=[_VMEM_SPEC, _VMEM_SPEC],
        out_specs=_VMEM_SPEC,
    )(ids.reshape(N, 1), lut)
    return out.reshape(B, S, D)


# ---------------------------------- main ------------------------------------ #

if __name__ == "__main__":
    key = jax.random.PRNGKey(0)
    k_ids, k_lut = jax.random.split(key)

    B, S = 2, 8
    x = jax.random.randint(k_ids, (B, S), 0, VOCAB, dtype=jnp.int32)
    lut = jax.random.normal(k_lut, (VOCAB, D_MODEL), jnp.float32) * 0.02

    out = embeddings_fwd(x, lut, D_MODEL)
    jax.block_until_ready(out)

    # Reference: plain-JAX embedding lookup * sqrt(d_model).
    ref = lut[x] * math.sqrt(D_MODEL)

    assert out.shape == (B, S, D_MODEL)
    assert jnp.all(jnp.isfinite(out))
    assert jnp.allclose(out, ref, atol=1e-5, rtol=1e-5)
    print("KERNEL_OK")
</pallas_src>

<mosaic_0001>
module attributes {stable_mosaic.version = 11 : i64} {
  func.func @_packed_embedding_kernel(%arg0: memref<4x4xi32, #tpu.memory_space<vmem>>, %arg1: memref<256x128xf32, #tpu.memory_space<vmem>>, %arg2: memref<4x128xf32, #tpu.memory_space<vmem>>) attributes {dimension_semantics = [], scalar_prefetch = 0 : i64, scratch_operands = 0 : i64, tpu.core_type = #tpu.core_type<tc>} {
    %0 = tpu.iota {dimensions = array<i32: 1>} : vector<4x256xi32>
    %cst = arith.constant 0.000000e+00 : f32
    %1 = vector.broadcast %cst : f32 to vector<4x256xf32>
    %c0 = arith.constant 0 : index
    %c0_0 = arith.constant 0 : index
    %2 = vector.load %arg0[%c0, %c0_0] : memref<4x4xi32, #tpu.memory_space<vmem>>, vector<4x1xi32>
    %c0_i32 = arith.constant 0 : i32
    %3 = vector.broadcast %c0_i32 : i32 to vector<4x1xi32>
    %4 = arith.addi %2, %3 : vector<4x1xi32>
    %5 = vector.broadcast %4 : vector<4x1xi32> to vector<4x256xi32>
    %6 = arith.cmpi eq, %0, %5 : vector<4x256xi32>
    %cst_1 = arith.constant 5.65685415 : f32
    %7 = vector.broadcast %cst_1 : f32 to vector<4x256xf32>
    %8 = arith.select %6, %7, %1 : vector<4x256xi1>, vector<4x256xf32>
    %c0_2 = arith.constant 0 : index
    %c1 = arith.constant 1 : index
    %9 = vector.load %arg0[%c0_2, %c1] : memref<4x4xi32, #tpu.memory_space<vmem>>, vector<4x1xi32>
    %c64_i32 = arith.constant 64 : i32
    %10 = vector.broadcast %c64_i32 : i32 to vector<4x1xi32>
    %11 = arith.addi %9, %10 : vector<4x1xi32>
    %12 = vector.broadcast %11 : vector<4x1xi32> to vector<4x256xi32>
    %13 = arith.cmpi eq, %0, %12 : vector<4x256xi32>
    %cst_3 = arith.constant 5.65685415 : f32
    %14 = vector.broadcast %cst_3 : f32 to vector<4x256xf32>
    %15 = arith.select %13, %14, %8 : vector<4x256xi1>, vector<4x256xf32>
    %c0_4 = arith.constant 0 : index
    %c2 = arith.constant 2 : index
    %16 = vector.load %arg0[%c0_4, %c2] : memref<4x4xi32, #tpu.memory_space<vmem>>, vector<4x1xi32>
    %c128_i32 = arith.constant 128 : i32
    %17 = vector.broadcast %c128_i32 : i32 to vector<4x1xi32>
    %18 = arith.addi %16, %17 : vector<4x1xi32>
    %19 = vector.broadcast %18 : vector<4x1xi32> to vector<4x256xi32>
    %20 = arith.cmpi eq, %0, %19 : vector<4x256xi32>
    %cst_5 = arith.constant 5.65685415 : f32
    %21 = vector.broadcast %cst_5 : f32 to vector<4x256xf32>
    %22 = arith.select %20, %21, %15 : vector<4x256xi1>, vector<4x256xf32>
    %c0_6 = arith.constant 0 : index
    %c3 = arith.constant 3 : index
    %23 = vector.load %arg0[%c0_6, %c3] : memref<4x4xi32, #tpu.memory_space<vmem>>, vector<4x1xi32>
    %c192_i32 = arith.constant 192 : i32
    %24 = vector.broadcast %c192_i32 : i32 to vector<4x1xi32>
    %25 = arith.addi %23, %24 : vector<4x1xi32>
    %26 = vector.broadcast %25 : vector<4x1xi32> to vector<4x256xi32>
    %27 = arith.cmpi eq, %0, %26 : vector<4x256xi32>
    %cst_7 = arith.constant 5.65685415 : f32
    %28 = vector.broadcast %cst_7 : f32 to vector<4x256xf32>
    %29 = arith.select %27, %28, %22 : vector<4x256xi1>, vector<4x256xf32>
    %c0_8 = arith.constant 0 : index
    %c0_9 = arith.constant 0 : index
    %30 = vector.load %arg1[%c0_8, %c0_9] : memref<256x128xf32, #tpu.memory_space<vmem>>, vector<256x128xf32>
    %cst_10 = arith.constant dense<0.000000e+00> : vector<4x128xf32>
    %31 = tpu.matmul %29, %30, %cst_10 {dimension_numbers = #tpu.dot_dimension_numbers<[1], [0], [0], [1], [0, 0, 1, 1], [], []>} : vector<4x256xf32>, vector<256x128xf32>, vector<4x128xf32> -> vector<4x128xf32>
    %c0_11 = arith.constant 0 : index
    %c0_12 = arith.constant 0 : index
    %32 = vector.load %arg2[%c0_11, %c0_12] : memref<4x128xf32, #tpu.memory_space<vmem>>, vector<4x128xf32>
    tpu.vector_store %arg2[%c0_11, %c0_12], %31 {strides = array<i32>} : memref<4x128xf32, #tpu.memory_space<vmem>>, vector<4x128xf32>,
    return
  }
}

</mosaic_0001>

<llo_original>
// kernel: tpu_custom_call.1
$region0: #{tpu_custom_call.1}
  #allocation0 [shape = 'u32[]', space=smem, size = 0x4, offset = 0x4, fixed_abs, tag = 'smem constant byte address 0x4 - core index']
  #allocation1 [shape = 'u32[72,128]{1,0:T(1,128)}', space=vmem, size = 0x9000, scoped, tag = 'internal scratch']
  %s0 = inlined_call_operand.hbm [shape: s32[4,4], index: 0, kind: input, shape index: {}]
  %s1 = inlined_call_operand.hbm [shape: f32[256,128], index: 1, kind: input, shape index: {}]
  %s2 = inlined_call_operand.hbm [shape: f32[4,128], index: 2, kind: output, shape index: {}]
  %s3 = sld [smem:[#allocation0]]
  $region26: #{tpu_custom_call.1} parent=0
    _
  %s5 = ssub.s32 1, %s3
  %s6 = scalar_select 0, %s5, %s3
  $region1: #{tpu_custom_call.1} parent=0
    #allocation2 [shape = 'u8[2048]{0}', space=vmem, size = 0x800, scoped, tag = 'input window, operand 0, single buffered']
    #allocation3 [shape = 's32[1]{0}', space=sflag, size = 0x4, scoped, tag = 'scoped memory for tpu_custom_call.1']
    #allocation4 [shape = 's32[1]{0}', space=sflag, size = 0x4, scoped, tag = 'scoped memory for tpu_custom_call.1']
    #allocation5 [shape = 'u8[131072]{0}', space=vmem, size = 0x20000, scoped, tag = 'input window, operand 1, single buffered']
    #allocation6 [shape = 's32[1]{0}', space=sflag, size = 0x4, scoped, tag = 'scoped memory for tpu_custom_call.1']
    #allocation7 [shape = 'u8[2048]{0}', space=vmem, size = 0x800, scoped, tag = 'output window, operand 0, single buffered']
    %7 = vsyncpa [#allocation3], 0
    %8 = vsyncpa [#allocation6], 0
    %9 = vsyncpa [#allocation4], 0
    // Predicated region
    $region2: #{tpu_custom_call.1} parent=1 // pred_check
      _
    $region3: #{tpu_custom_call.1} parent=1 // pred_check_branch
      %11 = sbr.rel (0) target = $region5
    $region4: #{tpu_custom_call.1} parent=1 // pred_region
      %13 = vsyncadd [#allocation3], 0
      %s15 = sshll.u32 %s0, 4
      %s16 = int_to_ptr.hbm [resolvable:$true] %s15
      %s17 = sshll.u32 [#allocation2], 4
      %s18 = int_to_ptr.vmem [resolvable:$true] %s17
      %20 = dma.hbm_to_vmem [thread:$0]  %s16, 64, %s18, [#allocation3]
    $region5: #{tpu_custom_call.1} parent=1 // pred_fallthru
      _
    // Predicated region
    $region6: #{tpu_custom_call.1} parent=1 // pred_check
      _
    $region7: #{tpu_custom_call.1} parent=1 // pred_check_branch
      %22 = sbr.rel (0) target = $region9
    $region8: #{tpu_custom_call.1} parent=1 // pred_region
      %24 = vsyncadd [#allocation6], 0
      %s25 = sshll.u32 %s1, 4
      %s26 = int_to_ptr.hbm [resolvable:$true] %s25
      %s27 = sshll.u32 [#allocation5], 4
      %s28 = int_to_ptr.vmem [resolvable:$true] %s27
      %33 = dma.hbm_to_vmem [thread:$0]  %s26, 4096, %s28, [#allocation6], 128, 128, 8
    $region9: #{tpu_custom_call.1} parent=1 // pred_fallthru
      _
    // Predicated region
    $region10: #{tpu_custom_call.1} parent=1 // pred_check
      _
    $region11: #{tpu_custom_call.1} parent=1 // pred_check_branch
      %35 = sbr.rel (0) target = $region13
    $region12: #{tpu_custom_call.1} parent=1 // pred_region
      %37 = dma.done [#allocation3], 64
    $region13: #{tpu_custom_call.1} parent=1 // pred_fallthru
      _
    // Predicated region
    $region14: #{tpu_custom_call.1} parent=1 // pred_check
      _
    $region15: #{tpu_custom_call.1} parent=1 // pred_check_branch
      %39 = sbr.rel (0) target = $region17
    $region16: #{tpu_custom_call.1} parent=1 // pred_region
      %41 = dma.done [#allocation6], 4096
    $region17: #{tpu_custom_call.1} parent=1 // pred_fallthru
      _
    %v42 = vlaneseq
    %v43 = vand.u32 %v42, 127
    %v44 = vadd.s32 %v43, 128
    %v45 = vld [vmem:[#allocation2] sm:$0xf]
    %46 = vset.pattern.permute.xlu0 0
    %47 = vperm.xlu0 %46, %v45
    %v48 = vpop.permute.xlu0 %47
    %vm49 = vcmp.eq.s32.totalorder %v43, %v48
    %vm50 = vcmp.eq.s32.totalorder %v44, %v48
    %v51 = vsel %vm49, 5.656854, 0.0
    %v52 = vsel %vm50, 5.656854, 0.0
    %v53 = vadd.s32 %v45, 64
    %54 = vset.pattern.permute.xlu0 1
    %55 = vperm.xlu0 %54, %v53
    %v56 = vpop.permute.xlu0 %55
    %vm57 = vcmp.eq.s32.totalorder %v43, %v56
    %vm58 = vcmp.eq.s32.totalorder %v44, %v56
    %v59 = vsel %vm57, 5.656854, %v51
    %v60 = vsel %vm58, 5.656854, %v52
    %v61 = vadd.s32 %v45, 128
    %62 = vset.pattern.permute.xlu0 2
    %63 = vperm.xlu0 %62, %v61
    %v64 = vpop.permute.xlu0 %63
    %vm65 = vcmp.eq.s32.totalorder %v43, %v64
    %vm66 = vcmp.eq.s32.totalorder %v44, %v64
    %v67 = vsel %vm65, 5.656854, %v59
    %v68 = vsel %vm66, 5.656854, %v60
    %v69 = vadd.s32 %v45, 192
    %70 = vset.pattern.permute.xlu0 3
    %71 = vperm.xlu0 %70, %v69
    %v72 = vpop.permute.xlu0 %71
    %vm73 = vcmp.eq.s32.totalorder %v43, %v72
    %vm74 = vcmp.eq.s32.totalorder %v44, %v72
    %v75 = vsel %vm73, 5.656854, %v67
    %v76 = vsel %vm74, 5.656854, %v68
    %v77 = vld [vmem:[#allocation5] sm:$0xff]
    %v78 = vld [vmem:[#allocation5 + $0x8] sm:$0xff]
    %v79 = vld [vmem:[#allocation5 + $0x10] sm:$0xff]
    %v80 = vld [vmem:[#allocation5 + $0x18] sm:$0xff]
    %v81 = vld [vmem:[#allocation5 + $0x20] sm:$0xff]
    %v82 = vld [vmem:[#allocation5 + $0x28] sm:$0xff]
    %v83 = vld [vmem:[#allocation5 + $0x30] sm:$0xff]
    %v84 = vld [vmem:[#allocation5 + $0x38] sm:$0xff]
    %v85 = vld [vmem:[#allocation5 + $0x40] sm:$0xff]
    %v86 = vld [vmem:[#allocation5 + $0x48] sm:$0xff]
    %v87 = vld [vmem:[#allocation5 + $0x50] sm:$0xff]
    %v88 = vld [vmem:[#allocation5 + $0x58] sm:$0xff]
    %v89 = vld [vmem:[#allocation5 + $0x60] sm:$0xff]
    %v90 = vld [vmem:[#allocation5 + $0x68] sm:$0xff]
    %v91 = vld [vmem:[#allocation5 + $0x70] sm:$0xff]
    %v92 = vld [vmem:[#allocation5 + $0x78] sm:$0xff]
    %v93 = vld [vmem:[#allocation5 + $0x80] sm:$0xff]
    %v94 = vld [vmem:[#allocation5 + $0x88] sm:$0xff]
    %v95 = vld [vmem:[#allocation5 + $0x90] sm:$0xff]
    %v96 = vld [vmem:[#allocation5 + $0x98] sm:$0xff]
    %v97 = vld [vmem:[#allocation5 + $0xa0] sm:$0xff]
    %v98 = vld [vmem:[#allocation5 + $0xa8] sm:$0xff]
    %v99 = vld [vmem:[#allocation5 + $0xb0] sm:$0xff]
    %v100 = vld [vmem:[#allocation5 + $0xb8] sm:$0xff]
    %v101 = vld [vmem:[#allocation5 + $0xc0] sm:$0xff]
    %v102 = vld [vmem:[#allocation5 + $0xc8] sm:$0xff]
    %v103 = vld [vmem:[#allocation5 + $0xd0] sm:$0xff]
    %v104 = vld [vmem:[#allocation5 + $0xd8] sm:$0xff]
    %v105 = vld [vmem:[#allocation5 + $0xe0] sm:$0xff]
    %v106 = vld [vmem:[#allocation5 + $0xe8] sm:$0xff]
    %v107 = vld [vmem:[#allocation5 + $0xf0] sm:$0xff]
    %v108 = vld [vmem:[#allocation5 + $0xf8] sm:$0xff]
    %109 = vmatpush.msra.mxu0 %v92
    %110 = vmatpush.msra.mxu0 %v91
    %111 = vmatpush.msra.mxu0 %v90
    %112 = vmatpush.msra.mxu0 %v89
    %113 = vmatpush.msra.mxu0 %v88
    %114 = vmatpush.msra.mxu0 %v87
    %115 = vmatpush.msra.mxu0 %v86
    %116 = vmatpush.msra.mxu0 %v85
    %117 = vmatpush.msra.mxu0 %v84
    %118 = vmatpush.msra.mxu0 %v83
    %119 = vmatpush.msra.mxu0 %v82
    %120 = vmatpush.msra.mxu0 %v81
    %121 = vmatpush.msra.mxu0 %v80
    %122 = vmatpush.msra.mxu0 %v79
    %123 = vmatpush.msra.mxu0 %v78
    %124 = vmatpush.msra.mxu0 %v77
    %125 = vmatmul.f32.gmra.mxu0 %v75
    %v126 = vpop.f32.mrf.mxu0
    %v127 = vadd.f32 0.0, %v126
    %128 = vdwg.mxu0
    %129 = vmatpush.msra.mxu0 %v108
    %130 = vmatpush.msra.mxu0 %v107
    %131 = vmatpush.msra.mxu0 %v106
    %132 = vmatpush.msra.mxu0 %v105
    %133 = vmatpush.msra.mxu0 %v104
    %134 = vmatpush.msra.mxu0 %v103
    %135 = vmatpush.msra.mxu0 %v102
    %136 = vmatpush.msra.mxu0 %v101
    %137 = vmatpush.msra.mxu0 %v100
    %138 = vmatpush.msra.mxu0 %v99
    %139 = vmatpush.msra.mxu0 %v98
    %140 = vmatpush.msra.mxu0 %v97
    %141 = vmatpush.msra.mxu0 %v96
    %142 = vmatpush.msra.mxu0 %v95
    %143 = vmatpush.msra.mxu0 %v94
    %144 = vmatpush.msra.mxu0 %v93
    %145 = vmatmul.f32.gmra.mxu0 %v76
    %v146 = vpop.f32.mrf.mxu0
    %v147 = vadd.f32 %v127, %v146
    %148 = vdwg.mxu0
    %149 = vst [vmem:[#allocation7] sm:$0xf] %v147
    // Predicated region
    $region18: #{tpu_custom_call.1} parent=1 // pred_check
      _
    $region19: #{tpu_custom_call.1} parent=1 // pred_check_branch
      %151 = sbr.rel (0) target = $region21
    $region20: #{tpu_custom_call.1} parent=1 // pred_region
      %153 = vsyncadd [#allocation4], 0
      %s155 = sshll.u32 [#allocation7], 4
      %s156 = int_to_ptr.vmem [resolvable:$true] %s155
      %s157 = sshll.u32 %s2, 4
      %s158 = int_to_ptr.hbm [resolvable:$true] %s157
      %160 = dma.vmem_to_hbm [thread:$0]  %s156, 64, %s158, [#allocation4]
    $region21: #{tpu_custom_call.1} parent=1 // pred_fallthru
      _
    // Predicated region
    $region22: #{tpu_custom_call.1} parent=1 // pred_check
      _
    $region23: #{tpu_custom_call.1} parent=1 // pred_check_branch
      %162 = sbr.rel (0) target = $region25
    $region24: #{tpu_custom_call.1} parent=1 // pred_region
      %164 = dma.done [#allocation4], 64
    $region25: #{tpu_custom_call.1} parent=1 // pred_fallthru
      _
    %165 = vsyncpa [#allocation3], 1
    %166 = vsyncpa [#allocation6], 1
    %167 = vsyncpa [#allocation4], 1

</llo_original>
